<compile_context>
chip_gen: v6e
topology: v6e:2x2x1
jax: 0.10.0
libtpu: 0.0.40
codegen_flags: <defaults>
</compile_context>

<pallas_src>
import functools

import jax
import jax.numpy as jnp
from jax.experimental import pallas as pl
from jax.experimental.pallas import tpu as pltpu

_LANE = 512  # lane-dense last dim (multiple of 128)


def _cdiv(a, b):
    return -(-a // b)


def _round_up(a, b):
    return _cdiv(a, b) * b


def _hw_plan():
    """Generation-dependent knobs: (max_tile_rows, vmem_limit_bytes)."""
    try:
        vmem = pltpu.get_tpu_info().vmem_capacity_bytes
    except Exception:
        vmem = 64 * 1024 * 1024
    if vmem >= 100 * 1024 * 1024:          # v5e / v6e: 128 MiB physical VMEM
        return 2048, 96 * 1024 * 1024
    return 1024, 40 * 1024 * 1024          # v7x: 64 MiB physical VMEM -> cap tiles


def _slab_plan(numel, max_tile_rows):
    """Return (rows, tile_rows, n_tiles) for a (rows, 512) slab of `numel` elements."""
    rows = _cdiv(numel, _LANE)
    if rows <= max_tile_rows:
        return rows, rows, 1               # full-extent single tile (any row count is legal)
    n = _cdiv(rows, max_tile_rows)
    tile = _round_up(_cdiv(rows, n), 32)   # balanced tiles, 32-row aligned (bf16/int8 safe)
    return rows, tile, _cdiv(rows, tile)


def _as_slab(x):
    """Lane-dense (rows, 512) view. Pure reshape (no copy) when x.size % 512 == 0; otherwise a
    one-off zero pad of the flat tail (zero pad is loss-neutral for MSE and clamped-log BCE)."""
    flat = x.reshape(-1)
    pad = (-flat.shape[0]) % _LANE
    if pad:
        flat = jnp.pad(flat, (0, pad))
    return flat.reshape(-1, _LANE)


def _accumulate_into(acc_ref, vals):
    """Fold a (tile_rows, LANE) f32 tile into the resident (8, LANE) accumulator block.

    tile_rows % 8 == 0 -> sublane-group partial sum: pure VALU vreg adds, no XLU, and only an
    (8, LANE) read-modify-write per slab per step.  Otherwise (tiny full-extent slabs only)
    a single cross-sublane reduce into row 0.
    """
    rows, lane = vals.shape
    if rows % 8 == 0:
        acc_ref[...] += jnp.sum(vals.reshape(rows // 8, 8, lane), axis=0)
    else:
        acc_ref[0:1, :] += jnp.sum(vals, axis=0, keepdims=True)


def _recon_losses_kernel(img1_ref, rimg1_ref, img2_ref, rimg2_ref,   # VMEM slab tiles
                         sq_acc_ref, bce_acc_ref,                    # (8, LANE) output accumulators
                         *, steps_per_split,
                         tile1, rows1, mask1,
                         tile2, rows2, mask2):
    s = pl.program_id(0)      # parallel split: one contiguous tile range per TensorCore
    i = pl.program_id(1)      # serial step within the split
    gstep = s * steps_per_split + i

    @pl.when(i == 0)
    def _init():
        sq_acc_ref[...] = jnp.zeros_like(sq_acc_ref)
        bce_acc_ref[...] = jnp.zeros_like(bce_acc_ref)

    # ---- reconstruct1: squared-error numerator (VPU only) ----
    d = rimg1_ref[...].astype(jnp.float32) - img1_ref[...].astype(jnp.float32)
    sq = d * d
    if mask1:  # tail-tile / short-slab rows are masked in-kernel (no wrapper pad copy)
        rid = jax.lax.broadcasted_iota(jnp.int32, (tile1, _LANE), 0) + gstep * tile1
        sq = jnp.where(rid < rows1, sq, 0.0)
    _accumulate_into(sq_acc_ref, sq)

    # ---- reconstruct2: BCE (pr='bj'), torch's log clamp at -100 ----
    #   -(y*log p + (1-y)*log(1-p)) == -(y*(log p - log(1-p)) + log(1-p))  (shorter VALU chain)
    p = rimg2_ref[...].astype(jnp.float32)
    y = img2_ref[...].astype(jnp.float32)
    log_p = jnp.maximum(jnp.log(p), jnp.float32(-100.0))
    log_1mp = jnp.maximum(jnp.log(1.0 - p), jnp.float32(-100.0))
    bce = -(y * (log_p - log_1mp) + log_1mp)
    if mask2:
        rid = jax.lax.broadcasted_iota(jnp.int32, (tile2, _LANE), 0) + gstep * tile2
        bce = jnp.where(rid < rows2, bce, 0.0)
    _accumulate_into(bce_acc_ref, bce)


@jax.jit
def total_weighted_loss(params, target, pred, z1, z2, img1, recon_img1, img2, recon_img2):
    """Images are logical NCHW; they are viewed as lane-dense (rows, 512) slabs for the kernel."""
    assert img1.shape == recon_img1.shape and img2.shape == recon_img2.shape
    n_img1, n_img2 = img1.size, img2.size

    max_tile_rows, vmem_limit = _hw_plan()

    img1_s, rimg1_s = _as_slab(img1), _as_slab(recon_img1)
    img2_s, rimg2_s = _as_slab(img2), _as_slab(recon_img2)

    rows1, tile1, n_tiles1 = _slab_plan(n_img1, max_tile_rows)
    rows2, tile2, n_tiles2 = _slab_plan(n_img2, max_tile_rows)

    n_steps = max(n_tiles1, n_tiles2)
    num_splits = 2 if n_steps >= 2 else 1            # v7x: both TensorCores; harmless on 1-TC chips
    steps_per_split = _cdiv(n_steps, num_splits)
    total_steps = num_splits * steps_per_split

    def slab_map(n_tiles):
        if n_tiles >= total_steps:
            return lambda s, i: (s * steps_per_split + i, 0)
        last = n_tiles - 1                            # clamp; re-read rows are masked to zero
        return lambda s, i: (jnp.minimum(s * steps_per_split + i, last), 0)

    mask1 = (rows1 % tile1 != 0) or (n_tiles1 < total_steps)
    mask2 = (rows2 % tile2 != 0) or (n_tiles2 < total_steps)

    kernel = functools.partial(
        _recon_losses_kernel,
        steps_per_split=steps_per_split,
        tile1=tile1, rows1=rows1, mask1=mask1,
        tile2=tile2, rows2=rows2, mask2=mask2)

    slab_bytes = sum(int(a.size) * a.dtype.itemsize
                     for a in (img1, recon_img1, img2, recon_img2))
    cost = pl.CostEstimate(
        flops=4 * n_img1 + 9 * n_img2,
        transcendentals=2 * n_img2,
        bytes_accessed=slab_bytes + 2 * num_splits * 8 * _LANE * 4)

    acc_shape = jax.ShapeDtypeStruct((num_splits, 8, _LANE), jnp.float32)
    acc_spec = pl.BlockSpec((None, 8, _LANE), lambda s, i: (s, 0, 0))

    sq_parts, bce_parts = pl.pallas_call(
        kernel,
        out_shape=(acc_shape, acc_shape),
        grid_spec=pltpu.PrefetchScalarGridSpec(
            num_scalar_prefetch=0,
            grid=(num_splits, steps_per_split),
            in_specs=[pl.BlockSpec((tile1, _LANE), slab_map(n_tiles1)),
                      pl.BlockSpec((tile1, _LANE), slab_map(n_tiles1)),
                      pl.BlockSpec((tile2, _LANE), slab_map(n_tiles2)),
                      pl.BlockSpec((tile2, _LANE), slab_map(n_tiles2))],
            out_specs=(acc_spec, acc_spec)),
        compiler_params=pltpu.CompilerParams(
            dimension_semantics=("parallel", "arbitrary"),
            vmem_limit_bytes=vmem_limit),
        cost_estimate=cost,
    )(img1_s, rimg1_s, img2_s, rimg2_s)

    recon1_loss = jnp.sum(sq_parts) / jnp.float32(n_img1)
    recon2_loss = jnp.sum(bce_parts) / jnp.float32(n_img2)

    # Tiny tensors (task prediction pair + latent pair, a few dozen elements each): computed with
    # plain XLA ops; streaming them through the image-slab grid costs more than it saves.
    task_loss = jnp.mean(jnp.square(pred.astype(jnp.float32) - target.astype(jnp.float32)))
    latent_loss = jnp.mean(jnp.square(z1.astype(jnp.float32) - z2.astype(jnp.float32)))

    latent_lv, r1_lv, r2_lv = params[0], params[1], params[2]
    recon_w, var_flag = params[3], params[4]

    def weighted(loss, log_var):
        return jnp.where(var_flag > 0.5, loss * jnp.exp(-log_var) + log_var, loss)

    latent_w = weighted(latent_loss, latent_lv)
    r1_w = weighted(recon1_loss, r1_lv)
    r2_w = weighted(recon2_loss, r2_lv)

    total_loss = task_loss + latent_w + recon_w * r1_w + recon_w * r2_w
    loss_dict = {"task": task_loss, "latent": latent_w,
                 "reconstruct1": r1_w, "reconstruct2": r2_w}
    return total_loss, loss_dict


def _reference(params, target, pred, z1, z2, img1, recon_img1, img2, recon_img2):
    latent_lv, r1_lv, r2_lv, recon_w, var_flag = [params[i] for i in range(5)]
    mse = lambda a, b: jnp.mean((a.astype(jnp.float32) - b.astype(jnp.float32)) ** 2)
    task = mse(pred, target)
    latent = mse(z1, z2)
    r1 = mse(recon_img1, img1)
    p = recon_img2.astype(jnp.float32)
    y = img2.astype(jnp.float32)
    r2 = -jnp.mean(y * jnp.maximum(jnp.log(p), -100.0)
                   + (1.0 - y) * jnp.maximum(jnp.log(1.0 - p), -100.0))
    w = lambda l, lv: jnp.where(var_flag > 0.5, l * jnp.exp(-lv) + lv, l)
    return task + w(latent, latent_lv) + recon_w * w(r1, r1_lv) + recon_w * w(r2, r2_lv)


if __name__ == "__main__":
    key = jax.random.PRNGKey(0)
    ks = jax.random.split(key, 8)

    B, C, H, W = 2, 4, 16, 16   # images NCHW
    D = 32                      # latent dim
    K = 8                       # task pred/target dim

    target = jax.random.normal(ks[0], (B, K), jnp.float32)
    pred = jax.random.normal(ks[1], (B, K), jnp.float32)
    z1 = jax.random.normal(ks[2], (B, D), jnp.float32)
    z2 = jax.random.normal(ks[3], (B, D), jnp.float32)
    img1 = jax.random.normal(ks[4], (B, C, H, W), jnp.float32)
    recon_img1 = jax.random.normal(ks[5], (B, C, H, W), jnp.float32)
    img2 = jax.random.uniform(ks[6], (B, C, H, W), jnp.float32)                        # BCE targets in [0,1]
    recon_img2 = jax.nn.sigmoid(jax.random.normal(ks[7], (B, C, H, W), jnp.float32))   # BCE probabilities

    # Parameters: init_loss_weights=None -> all log_vars = 0.0; exercise the var branch.
    latent_log_var = 0.0
    reconstruct1_log_var = 0.0
    reconstruct2_log_var = 0.0
    recon_weight = 0.5
    var = True
    params = jnp.array([latent_log_var, reconstruct1_log_var, reconstruct2_log_var,
                        recon_weight, 1.0 if var else 0.0, 0.0, 0.0, 0.0], jnp.float32)

    total, loss_dict = total_weighted_loss(params, target, pred, z1, z2,
                                           img1, recon_img1, img2, recon_img2)
    total = jax.block_until_ready(total)

    ref = _reference(params, target, pred, z1, z2, img1, recon_img1, img2, recon_img2)
    assert jnp.allclose(total, ref, rtol=1e-5, atol=1e-5), (total, ref)

    # TODO(synk): task_criterion is an injected callable in the PyTorch module; a synthetic
    # MSE criterion is used here since no concrete criterion is defined in the source.
    print("KERNEL_OK")
</pallas_src>

<mosaic_0001>
module attributes {stable_mosaic.version = 11 : i64} {
  func.func @_recon_losses_kernel(%arg0: i32, %arg1: i32, %arg2: memref<4x512xf32, #tpu.memory_space<vmem>>, %arg3: memref<4x512xf32, #tpu.memory_space<vmem>>, %arg4: memref<4x512xf32, #tpu.memory_space<vmem>>, %arg5: memref<4x512xf32, #tpu.memory_space<vmem>>, %arg6: memref<1x8x512xf32, #tpu.memory_space<vmem>>, %arg7: memref<1x8x512xf32, #tpu.memory_space<vmem>>) attributes {dimension_semantics = [#tpu.dimension_semantics<parallel>, #tpu.dimension_semantics<arbitrary>], iteration_bounds = array<i64: 1, 1>, scalar_prefetch = 0 : i64, scratch_operands = 0 : i64, tpu.core_type = #tpu.core_type<tc>, window_params = [{transform_indices = @transform_0, window_bounds = array<i64: 4, 512>}, {transform_indices = @transform_1, window_bounds = array<i64: 4, 512>}, {transform_indices = @transform_2, window_bounds = array<i64: 4, 512>}, {transform_indices = @transform_3, window_bounds = array<i64: 4, 512>}, {transform_indices = @transform_4, window_bounds = array<i64: 1, 8, 512>}, {transform_indices = @transform_5, window_bounds = array<i64: 1, 8, 512>}]} {
    %c0_i32 = arith.constant 0 : i32
    %0 = arith.cmpi eq, %arg1, %c0_i32 : i32
    %1 = arith.extui %0 : i1 to i32
    %c0_i32_0 = arith.constant 0 : i32
    %2 = arith.cmpi ne, %1, %c0_i32_0 : i32
    scf.if %2 {
      %cst_25 = arith.constant 0.000000e+00 : f32
      %38 = vector.broadcast %cst_25 : f32 to vector<8x512xf32>
      %c0_26 = arith.constant 0 : index
      %c0_27 = arith.constant 0 : index
      %c0_28 = arith.constant 0 : index
      %39 = vector.load %arg6[%c0_26, %c0_27, %c0_28] : memref<1x8x512xf32, #tpu.memory_space<vmem>>, vector<1x8x512xf32>
      %40 = vector.shape_cast %39 : vector<1x8x512xf32> to vector<8x512xf32>
      %41 = vector.shape_cast %38 : vector<8x512xf32> to vector<1x8x512xf32>
      tpu.vector_store %arg6[%c0_26, %c0_27, %c0_28], %41 {strides = array<i32>} : memref<1x8x512xf32, #tpu.memory_space<vmem>>, vector<1x8x512xf32>,
      %cst_29 = arith.constant 0.000000e+00 : f32
      %42 = vector.broadcast %cst_29 : f32 to vector<8x512xf32>
      %c0_30 = arith.constant 0 : index
      %c0_31 = arith.constant 0 : index
      %c0_32 = arith.constant 0 : index
      %43 = vector.load %arg7[%c0_30, %c0_31, %c0_32] : memref<1x8x512xf32, #tpu.memory_space<vmem>>, vector<1x8x512xf32>
      %44 = vector.shape_cast %43 : vector<1x8x512xf32> to vector<8x512xf32>
      %45 = vector.shape_cast %42 : vector<8x512xf32> to vector<1x8x512xf32>
      tpu.vector_store %arg7[%c0_30, %c0_31, %c0_32], %45 {strides = array<i32>} : memref<1x8x512xf32, #tpu.memory_space<vmem>>, vector<1x8x512xf32>,
    } else {
    }
    %c0 = arith.constant 0 : index
    %c0_1 = arith.constant 0 : index
    %3 = vector.load %arg3[%c0, %c0_1] : memref<4x512xf32, #tpu.memory_space<vmem>>, vector<4x512xf32>
    %c0_2 = arith.constant 0 : index
    %c0_3 = arith.constant 0 : index
    %4 = vector.load %arg2[%c0_2, %c0_3] : memref<4x512xf32, #tpu.memory_space<vmem>>, vector<4x512xf32>
    %5 = arith.subf %3, %4 : vector<4x512xf32>
    %6 = arith.mulf %5, %5 : vector<4x512xf32>
    %c0_4 = arith.constant 0 : index
    %c0_5 = arith.constant 0 : index
    %c0_6 = arith.constant 0 : index
    %7 = vector.load %arg6[%c0_4, %c0_5, %c0_6] : memref<1x8x512xf32, #tpu.memory_space<vmem>>, vector<1x1x512xf32>
    %8 = vector.shape_cast %7 : vector<1x1x512xf32> to vector<1x512xf32>
    %cst = arith.constant dense<0.000000e+00> : vector<512xf32>
    %9 = vector.multi_reduction <add>, %6, %cst [0] : vector<4x512xf32> to vector<512xf32>
    %10 = vector.shape_cast %9 : vector<512xf32> to vector<1x512xf32>
    %11 = arith.addf %8, %10 : vector<1x512xf32>
    %c0_7 = arith.constant 0 : index
    %c0_8 = arith.constant 0 : index
    %c0_9 = arith.constant 0 : index
    %12 = vector.load %arg6[%c0_7, %c0_8, %c0_9] : memref<1x8x512xf32, #tpu.memory_space<vmem>>, vector<1x1x512xf32>
    %13 = vector.shape_cast %12 : vector<1x1x512xf32> to vector<1x512xf32>
    %14 = vector.shape_cast %11 : vector<1x512xf32> to vector<1x1x512xf32>
    tpu.vector_store %arg6[%c0_7, %c0_8, %c0_9], %14 {strides = array<i32>} : memref<1x8x512xf32, #tpu.memory_space<vmem>>, vector<1x1x512xf32>,
    %c0_10 = arith.constant 0 : index
    %c0_11 = arith.constant 0 : index
    %15 = vector.load %arg5[%c0_10, %c0_11] : memref<4x512xf32, #tpu.memory_space<vmem>>, vector<4x512xf32>
    %c0_12 = arith.constant 0 : index
    %c0_13 = arith.constant 0 : index
    %16 = vector.load %arg4[%c0_12, %c0_13] : memref<4x512xf32, #tpu.memory_space<vmem>>, vector<4x512xf32>
    %17 = math.log %15 : vector<4x512xf32>
    %cst_14 = arith.constant -1.000000e+02 : f32
    %18 = vector.broadcast %cst_14 : f32 to vector<4x512xf32>
    %19 = arith.maximumf %17, %18 : vector<4x512xf32>
    %cst_15 = arith.constant 1.000000e+00 : f32
    %20 = vector.broadcast %cst_15 : f32 to vector<4x512xf32>
    %21 = arith.subf %20, %15 : vector<4x512xf32>
    %22 = math.log %21 : vector<4x512xf32>
    %cst_16 = arith.constant -1.000000e+02 : f32
    %23 = vector.broadcast %cst_16 : f32 to vector<4x512xf32>
    %24 = arith.maximumf %22, %23 : vector<4x512xf32>
    %25 = arith.subf %19, %24 : vector<4x512xf32>
    %26 = arith.mulf %16, %25 : vector<4x512xf32>
    %27 = arith.addf %26, %24 : vector<4x512xf32>
    %cst_17 = arith.constant 0.000000e+00 : f32
    %28 = vector.broadcast %cst_17 : f32 to vector<4x512xf32>
    %29 = arith.subf %28, %27 : vector<4x512xf32>
    %c0_18 = arith.constant 0 : index
    %c0_19 = arith.constant 0 : index
    %c0_20 = arith.constant 0 : index
    %30 = vector.load %arg7[%c0_18, %c0_19, %c0_20] : memref<1x8x512xf32, #tpu.memory_space<vmem>>, vector<1x1x512xf32>
    %31 = vector.shape_cast %30 : vector<1x1x512xf32> to vector<1x512xf32>
    %cst_21 = arith.constant dense<0.000000e+00> : vector<512xf32>
    %32 = vector.multi_reduction <add>, %29, %cst_21 [0] : vector<4x512xf32> to vector<512xf32>
    %33 = vector.shape_cast %32 : vector<512xf32> to vector<1x512xf32>
    %34 = arith.addf %31, %33 : vector<1x512xf32>
    %c0_22 = arith.constant 0 : index
    %c0_23 = arith.constant 0 : index
    %c0_24 = arith.constant 0 : index
    %35 = vector.load %arg7[%c0_22, %c0_23, %c0_24] : memref<1x8x512xf32, #tpu.memory_space<vmem>>, vector<1x1x512xf32>
    %36 = vector.shape_cast %35 : vector<1x1x512xf32> to vector<1x512xf32>
    %37 = vector.shape_cast %34 : vector<1x512xf32> to vector<1x1x512xf32>
    tpu.vector_store %arg7[%c0_22, %c0_23, %c0_24], %37 {strides = array<i32>} : memref<1x8x512xf32, #tpu.memory_space<vmem>>, vector<1x1x512xf32>,
    return
  }
  func.func @transform_0(%arg0: i32, %arg1: i32) -> (i32, i32) {
    %c1_i32 = arith.constant 1 : i32
    %0 = arith.muli %arg0, %c1_i32 : i32
    %1 = arith.addi %0, %arg1 : i32
    %c0_i32 = arith.constant 0 : i32
    %c0_i32_0 = arith.constant 0 : i32
    return %1, %c0_i32 : i32, i32
  }
  func.func @transform_1(%arg0: i32, %arg1: i32) -> (i32, i32) {
    %c1_i32 = arith.constant 1 : i32
    %0 = arith.muli %arg0, %c1_i32 : i32
    %1 = arith.addi %0, %arg1 : i32
    %c0_i32 = arith.constant 0 : i32
    %c0_i32_0 = arith.constant 0 : i32
    return %1, %c0_i32 : i32, i32
  }
  func.func @transform_2(%arg0: i32, %arg1: i32) -> (i32, i32) {
    %c1_i32 = arith.constant 1 : i32
    %0 = arith.muli %arg0, %c1_i32 : i32
    %1 = arith.addi %0, %arg1 : i32
    %c0_i32 = arith.constant 0 : i32
    %c0_i32_0 = arith.constant 0 : i32
    return %1, %c0_i32 : i32, i32
  }
  func.func @transform_3(%arg0: i32, %arg1: i32) -> (i32, i32) {
    %c1_i32 = arith.constant 1 : i32
    %0 = arith.muli %arg0, %c1_i32 : i32
    %1 = arith.addi %0, %arg1 : i32
    %c0_i32 = arith.constant 0 : i32
    %c0_i32_0 = arith.constant 0 : i32
    return %1, %c0_i32 : i32, i32
  }
  func.func @transform_4(%arg0: i32, %arg1: i32) -> (i32, i32, i32) {
    %c0_i32 = arith.constant 0 : i32
    %c0_i32_0 = arith.constant 0 : i32
    %c0_i32_1 = arith.constant 0 : i32
    return %arg0, %c0_i32, %c0_i32_0 : i32, i32, i32
  }
  func.func @transform_5(%arg0: i32, %arg1: i32) -> (i32, i32, i32) {
    %c0_i32 = arith.constant 0 : i32
    %c0_i32_0 = arith.constant 0 : i32
    %c0_i32_1 = arith.constant 0 : i32
    return %arg0, %c0_i32, %c0_i32_0 : i32, i32, i32
  }
}

</mosaic_0001>

<llo_original>
// kernel: total_weighted_loss.1
$region0: #{total_weighted_loss.1}
  #allocation0 [shape = 'u32[]', space=smem, size = 0x4, offset = 0x4, fixed_abs, tag = 'smem constant byte address 0x4 - core index']
  #allocation1 [shape = 'u32[144,128]{1,0:T(1,128)}', space=vmem, size = 0x12000, scoped, tag = 'internal scratch']
  %s0 = inlined_call_operand.vmem [shape: f32[4,512], index: 0, kind: input, shape index: {}]
  %s1 = inlined_call_operand.vmem [shape: f32[4,512], index: 1, kind: input, shape index: {}]
  %s2 = inlined_call_operand.vmem [shape: f32[4,512], index: 2, kind: input, shape index: {}]
  %s3 = inlined_call_operand.vmem [shape: f32[4,512], index: 3, kind: input, shape index: {}]
  %s4 = inlined_call_operand.vmem [shape: f32[1,8,512], index: 4, kind: output, shape index: {0}]
  %s5 = inlined_call_operand.vmem [shape: f32[1,8,512], index: 5, kind: output, shape index: {1}]
  %6 = xla_tuple %s4, %s5
  %s7 = sld [smem:[#allocation0]]
  $region38: #{total_weighted_loss.1} parent=0
    _
  %s9 = ssub.s32 1, %s7
  %s10 = scalar_select 0, %s9, %s7
  // Predicated region
  $region2: #{total_weighted_loss.1} parent=0 // pred_check
    _
  $region3: #{total_weighted_loss.1} parent=0 // pred_check_branch
    %12 = sbr.rel (0) target = $region5
  $region4: #{total_weighted_loss.1} parent=0 // pred_region
    %s13 = sadd.s32 0, 0
    %p14 = scmp.lt.s32.totalorder %s13, 0
    %s15 = scalar_select %p14, %s13, 0
    %s16 = smul.addr %s15, 4
    %s17 = smul.addr %s16, 4
    %s18 = scalar_lea.vmem %s0, %s17
    %s19 = sadd.s32 0, 0
  $region5: #{total_weighted_loss.1} parent=0 // pred_fallthru
    _
  // Predicated region
  $region6: #{total_weighted_loss.1} parent=0 // pred_check
    _
  $region7: #{total_weighted_loss.1} parent=0 // pred_check_branch
    %21 = sbr.rel (0) target = $region9
  $region8: #{total_weighted_loss.1} parent=0 // pred_region
    %s22 = sadd.s32 0, 0
    %p23 = scmp.lt.s32.totalorder %s22, 0
    %s24 = scalar_select %p23, %s22, 0
    %s25 = smul.addr %s24, 4
    %s26 = smul.addr %s25, 4
    %s27 = scalar_lea.vmem %s1, %s26
    %s28 = sadd.s32 0, 0
  $region9: #{total_weighted_loss.1} parent=0 // pred_fallthru
    _
  // Predicated region
  $region10: #{total_weighted_loss.1} parent=0 // pred_check
    _
  $region11: #{total_weighted_loss.1} parent=0 // pred_check_branch
    %30 = sbr.rel (0) target = $region13
  $region12: #{total_weighted_loss.1} parent=0 // pred_region
    %s31 = sadd.s32 0, 0
    %p32 = scmp.lt.s32.totalorder %s31, 0
    %s33 = scalar_select %p32, %s31, 0
    %s34 = smul.addr %s33, 4
    %s35 = smul.addr %s34, 4
    %s36 = scalar_lea.vmem %s2, %s35
    %s37 = sadd.s32 0, 0
  $region13: #{total_weighted_loss.1} parent=0 // pred_fallthru
    _
  // Predicated region
  $region14: #{total_weighted_loss.1} parent=0 // pred_check
    _
  $region15: #{total_weighted_loss.1} parent=0 // pred_check_branch
    %39 = sbr.rel (0) target = $region17
  $region16: #{total_weighted_loss.1} parent=0 // pred_region
    %s40 = sadd.s32 0, 0
    %p41 = scmp.lt.s32.totalorder %s40, 0
    %s42 = scalar_select %p41, %s40, 0
    %s43 = smul.addr %s42, 4
    %s44 = smul.addr %s43, 4
    %s45 = scalar_lea.vmem %s3, %s44
    %s46 = sadd.s32 0, 0
  $region17: #{total_weighted_loss.1} parent=0 // pred_fallthru
    _
  %s47 = sadd.s32 0, 0
  %p48 = scmp.lt.s32.totalorder %s47, 0
  %s49 = scalar_select %p48, %s47, 0
  %s50 = smul.addr %s49, 4
  %s51 = smul.addr %s50, 4
  %s52 = scalar_lea.vmem %s0, %s51
  %s53 = sadd.s32 0, 0
  %p54 = scmp.lt.s32.totalorder %s53, 0
  %s55 = scalar_select %p54, %s53, 0
  %s56 = smul.addr %s55, 4
  %s57 = smul.addr %s56, 4
  %s58 = scalar_lea.vmem %s1, %s57
  %s59 = sadd.s32 0, 0
  %p60 = scmp.lt.s32.totalorder %s59, 0
  %s61 = scalar_select %p60, %s59, 0
  %s62 = smul.addr %s61, 4
  %s63 = smul.addr %s62, 4
  %s64 = scalar_lea.vmem %s2, %s63
  %s65 = sadd.s32 0, 0
  %p66 = scmp.lt.s32.totalorder %s65, 0
  %s67 = scalar_select %p66, %s65, 0
  %s68 = smul.addr %s67, 4
  %s69 = smul.addr %s68, 4
  %s70 = scalar_lea.vmem %s3, %s69
  %s71 = sadd.s32 0, 0
  %p72 = scmp.lt.s32.totalorder %s71, 0
  %s73 = scalar_select %p72, %s71, 0
  %s74 = smul.addr %s73, 4
  %s75 = smul.addr %s74, 4
  %s76 = scalar_lea.vmem %s0, %s75
  %s77 = sadd.s32 0, 0
  %s78 = sadd.s32 0, 0
  %p79 = scmp.lt.s32.totalorder %s78, 0
  %s80 = scalar_select %p79, %s78, 0
  %s81 = smul.addr %s80, 4
  %s82 = smul.addr %s81, 4
  %s83 = scalar_lea.vmem %s1, %s82
  %s84 = sadd.s32 0, 0
  %s85 = sadd.s32 0, 0
  %p86 = scmp.lt.s32.totalorder %s85, 0
  %s87 = scalar_select %p86, %s85, 0
  %s88 = smul.addr %s87, 4
  %s89 = smul.addr %s88, 4
  %s90 = scalar_lea.vmem %s2, %s89
  %s91 = sadd.s32 0, 0
  %s92 = sadd.s32 0, 0
  %p93 = scmp.lt.s32.totalorder %s92, 0
  %s94 = scalar_select %p93, %s92, 0
  %s95 = smul.addr %s94, 4
  %s96 = smul.addr %s95, 4
  %s97 = scalar_lea.vmem %s3, %s96
  %s98 = sadd.s32 0, 0
  %p99 = scmp.eq.s32.totalorder 0, 0
  // Predicated region
  $region18: #{total_weighted_loss.1} parent=0 // pred_check
    %p100 = pneg %p99
  $region19: #{total_weighted_loss.1} parent=0 // pred_check_branch
    %102 = sbr.rel (%p100) target = $region21
  $region20: #{total_weighted_loss.1} parent=0 // pred_region
    %103 = vst [vmem:[%s4] sm:$0xff] 0.0
    %104 = vst [vmem:[%s4 + $0x8] sm:$0xff] 0.0
    %105 = vst [vmem:[%s4 + $0x10] sm:$0xff] 0.0
    %106 = vst [vmem:[%s4 + $0x18] sm:$0xff] 0.0
    %107 = vst [vmem:[%s5] sm:$0xff] 0.0
    %108 = vst [vmem:[%s5 + $0x8] sm:$0xff] 0.0
    %109 = vst [vmem:[%s5 + $0x10] sm:$0xff] 0.0
    %110 = vst [vmem:[%s5 + $0x18] sm:$0xff] 0.0
  $region21: #{total_weighted_loss.1} parent=0 // pred_fallthru
    _
  %v111 = vld [vmem:[%s83] sm:$0xff]
  %v112 = vld [vmem:[%s83 + $0x8] sm:$0xff]
  %v113 = vld [vmem:[%s76] sm:$0xff]
  %v114 = vld [vmem:[%s76 + $0x8] sm:$0xff]
  %v115 = vsub.f32 %v111, %v113
  %v116 = vsub.f32 %v112, %v114
  %v117 = vmul.f32 %v115, %v115
  %v118 = vmul.f32 %v116, %v116
  %v119 = vld [vmem:[%s4] ss:$8 sm:$0xf]
  %v122 = vcombine.high %v117, %v117
  %v123 = vcombine.high %v118, %v118
  %vm126 = vcmask 1043456
  %v127 = vsel %vm126, %v117, 0.0
  %v128 = vrot.slane %v127, 4
  %v129 = vadd.f32 %v127, %v128
  %v130 = vrot.slane %v129, 2
  %v131 = vadd.f32 %v129, %v130
  %v132 = vrot.slane %v131, 1
  %v133 = vadd.f32 %v131, %v132
  %v134 = vsel %vm126, %v122, 0.0
  %v135 = vrot.slane %v134, 4
  %v136 = vadd.f32 %v134, %v135
  %v137 = vrot.slane %v136, 2
  %v138 = vadd.f32 %v136, %v137
  %v139 = vrot.slane %v138, 1
  %v140 = vadd.f32 %v138, %v139
  %v141 = vsel %vm126, %v118, 0.0
  %v142 = vrot.slane %v141, 4
  %v143 = vadd.f32 %v141, %v142
  %v144 = vrot.slane %v143, 2
  %v145 = vadd.f32 %v143, %v144
  %v146 = vrot.slane %v145, 1
  %v147 = vadd.f32 %v145, %v146
  %v148 = vsel %vm126, %v123, 0.0
  %v149 = vrot.slane %v148, 4
  %v150 = vadd.f32 %v148, %v149
  %v151 = vrot.slane %v150, 2
  %v152 = vadd.f32 %v150, %v151
  %v153 = vrot.slane %v152, 1
  %v154 = vadd.f32 %v152, %v153
  %v159 = vcombine.low %v133, %v140
  %v160 = vcombine.low %v147, %v154
  %v162 = vunpack.c.l.s4 1966171168
  %v163 = vunpack.c.0.s8 %v162
  %v164 = vlaneseq
  %v165 = vshrl.u32 %v164, 7
  %v166 = vsub.s32 %v163, %v165
  %v167 = vrot.slane %v159, %v166
  %v169 = vunpack.c.l.s4 1966171168
  %v170 = vunpack.c.0.s8 %v169
  %v171 = vlaneseq
  %v172 = vshrl.u32 %v171, 7
  %v173 = vsub.s32 %v170, %v172
  %v174 = vrot.slane %v160, %v173
  %v175 = vcombine.low %v167, %v174
  %v177 = vunpack.c.l.s4 1966171168
  %v178 = vunpack.c.0.s8 %v177
  %v179 = vlaneseq
  %v180 = vshrl.u32 %v179, 7
  %v181 = vsub.s32 %v178, %v180
  %v182 = vrot.slane %v175, %v181
  %v184 = vadd.f32 %v119, %v182
  %v185 = vlaneseq
  %vm186 = vcmp.ge.s32.totalorder %v185, 0
  %vm187 = vcmp.lt.s32.totalorder %v185, 512
  %vm188 = vmand %vm186, %vm187
  %189 = vst.msk [vmem:[%s4] ss:$8 sm:$0xf] %vm188, %v184
  %190 = vst.msk [vmem:[%s4] ss:$8 sm:$0x0] %vm188, %v184
  %v191 = vld [vmem:[%s97] sm:$0xff]
  %v192 = vld [vmem:[%s97 + $0x8] sm:$0xff]
  %v193 = vld [vmem:[%s90] sm:$0xff]
  %v194 = vld [vmem:[%s90 + $0x8] sm:$0xff]
  %v195 = vlog2.pop %v191
  %v196 = vmul.f32 %v195, 0.6931472
  %v197 = vlog2.pop %v192
  %v198 = vmul.f32 %v197, 0.6931472
  %v199 = vmax.f32 %v196, -100.0
  %v200 = vmax.f32 %v198, -100.0
  %v201 = vsub.f32 1.0, %v191
  %v202 = vsub.f32 1.0, %v192
  %v203 = vlog2.pop %v201
  %v204 = vmul.f32 %v203, 0.6931472
  %v205 = vlog2.pop %v202
  %v206 = vmul.f32 %v205, 0.6931472
  %v207 = vmax.f32 %v204, -100.0
  %v208 = vmax.f32 %v206, -100.0
  %v209 = vsub.f32 %v199, %v207
  %v210 = vsub.f32 %v200, %v208
  %v211 = vmul.f32 %v193, %v209
  %v212 = vmul.f32 %v194, %v210
  %v213 = vadd.f32 %v211, %v207
  %v214 = vadd.f32 %v212, %v208
  %v215 = vsub.f32 0.0, %v213
  %v216 = vsub.f32 0.0, %v214
  %v217 = vld [vmem:[%s5] ss:$8 sm:$0xf]
  %v220 = vcombine.high %v215, %v215
  %v221 = vcombine.high %v216, %v216
  %v224 = vsel %vm126, %v215, 0.0
  %v225 = vrot.slane %v224, 4
  %v226 = vadd.f32 %v224, %v225
  %v227 = vrot.slane %v226, 2
  %v228 = vadd.f32 %v226, %v227
  %v229 = vrot.slane %v228, 1
  %v230 = vadd.f32 %v228, %v229
  %v231 = vsel %vm126, %v220, 0.0
  %v232 = vrot.slane %v231, 4
  %v233 = vadd.f32 %v231, %v232
  %v234 = vrot.slane %v233, 2
  %v235 = vadd.f32 %v233, %v234
  %v236 = vrot.slane %v235, 1
  %v237 = vadd.f32 %v235, %v236
  %v238 = vsel %vm126, %v216, 0.0
  %v239 = vrot.slane %v238, 4
  %v240 = vadd.f32 %v238, %v239
  %v241 = vrot.slane %v240, 2
  %v242 = vadd.f32 %v240, %v241
  %v243 = vrot.slane %v242, 1
  %v244 = vadd.f32 %v242, %v243
  %v245 = vsel %vm126, %v221, 0.0
  %v246 = vrot.slane %v245, 4
  %v247 = vadd.f32 %v245, %v246
  %v248 = vrot.slane %v247, 2
  %v249 = vadd.f32 %v247, %v248
  %v250 = vrot.slane %v249, 1
  %v251 = vadd.f32 %v249, %v250
  %v256 = vcombine.low %v230, %v237
  %v257 = vcombine.low %v244, %v251
  %v259 = vunpack.c.l.s4 1966171168
  %v260 = vunpack.c.0.s8 %v259
  %v261 = vlaneseq
  %v262 = vshrl.u32 %v261, 7
  %v263 = vsub.s32 %v260, %v262
  %v264 = vrot.slane %v256, %v263
  %v266 = vunpack.c.l.s4 1966171168
  %v267 = vunpack.c.0.s8 %v266
  %v268 = vlaneseq
  %v269 = vshrl.u32 %v268, 7
  %v270 = vsub.s32 %v267, %v269
  %v271 = vrot.slane %v257, %v270
  %v272 = vcombine.low %v264, %v271
  %v274 = vunpack.c.l.s4 1966171168
  %v275 = vunpack.c.0.s8 %v274
  %v276 = vlaneseq
  %v277 = vshrl.u32 %v276, 7
  %v278 = vsub.s32 %v275, %v277
  %v279 = vrot.slane %v272, %v278
  %v281 = vadd.f32 %v217, %v279
  %282 = vst.msk [vmem:[%s5] ss:$8 sm:$0xf] %vm188, %v281
  %283 = vst.msk [vmem:[%s5] ss:$8 sm:$0x0] %vm188, %v281
  // Predicated region
  $region22: #{total_weighted_loss.1} parent=0 // pred_check
    _
  $region23: #{total_weighted_loss.1} parent=0 // pred_check_branch
    %285 = sbr.rel (0) target = $region25
  $region24: #{total_weighted_loss.1} parent=0 // pred_region
    _
  $region25: #{total_weighted_loss.1} parent=0 // pred_fallthru
    _
  // Predicated region
  $region26: #{total_weighted_loss.1} parent=0 // pred_check
    _
  $region27: #{total_weighted_loss.1} parent=0 // pred_check_branch
    %287 = sbr.rel (0) target = $region29
  $region28: #{total_weighted_loss.1} parent=0 // pred_region
    _
  $region29: #{total_weighted_loss.1} parent=0 // pred_fallthru
    _
  // Predicated region
  $region30: #{total_weighted_loss.1} parent=0 // pred_check
    _
  $region31: #{total_weighted_loss.1} parent=0 // pred_check_branch
    %289 = sbr.rel (0) target = $region33
  $region32: #{total_weighted_loss.1} parent=0 // pred_region
    _
  $region33: #{total_weighted_loss.1} parent=0 // pred_fallthru
    _
  // Predicated region
  $region34: #{total_weighted_loss.1} parent=0 // pred_check
    _
  $region35: #{total_weighted_loss.1} parent=0 // pred_check_branch
    %291 = sbr.rel (0) target = $region37
  $region36: #{total_weighted_loss.1} parent=0 // pred_region
    _
  $region37: #{total_weighted_loss.1} parent=0 // pred_fallthru
    _

</llo_original>
